<compile_context>
chip_gen: v5e
topology: v5e:2x2
jax: 0.10.0
libtpu: 0.0.40
codegen_flags: <defaults>
</compile_context>

<pallas_src>
import math
from functools import partial

import jax
import jax.numpy as jnp
from jax import lax
from jax.experimental import pallas as pl
from jax.experimental.pallas import tpu as pltpu


def router_kernel(cbar_ref, x_ref, mask_ref, out_ref, score_ref, *, tile, topk):
    ti = pl.program_id(1)

    # ---- per-Sx-tile score: (1, TILE) = cbar (1,H) . x_tile (TILE,H)^T -----
    x = x_ref[0]                                                   # (TILE, H)
    cbar = cbar_ref[0]                                             # (1, H)
    s = lax.dot_general(cbar, x, (((1,), (1,)), ((), ())),
                        preferred_element_type=jnp.float32)        # (1, TILE)

    # masked fill with a large finite negative (no NaNs for all-masked rows).
    s = jnp.where(mask_ref[0] == 0, jnp.float32(-1e30), s)

    start = pl.multiple_of(ti * tile, tile)                        # 128-aligned
    score_ref[:, pl.ds(start, tile)] = s

    # ---- SelecterTopk(k): once per batch row, on the full score row --------
    @pl.when(ti == pl.num_programs(1) - 1)
    def _():
        sc = score_ref[...]                                        # (1, Sx_pad)
        idx = lax.broadcasted_iota(jnp.int32, sc.shape, 1)
        invalid = jnp.int32(sc.shape[-1])
        ind = jnp.zeros(sc.shape, jnp.float32)
        work = sc
        for _ in range(topk):          # static unroll; exact f32 comparisons
            mx = jnp.max(work, axis=-1, keepdims=True)
            tie = work == mx
            win = jnp.min(jnp.where(tie, idx, invalid), axis=-1, keepdims=True)
            hit = idx == win           # first occurrence among ties (stable)
            ind = jnp.where(hit, jnp.float32(1.0), ind)
            work = jnp.where(hit, jnp.float32(-jnp.inf), work)
        out_ref[...] = ind.reshape(out_ref.shape)


def router_forward(x, cond, mask, w, b, *, nheads, topk,
                   compute_dtype=jnp.bfloat16, tile_sx=512):
    B, Sx, H = x.shape
    Sc = cond.shape[1]
    head_size = H // nheads
    scale = 1.0 / (nheads * Sc * math.sqrt(head_size))

    # ---- hoisted condition branch (tiny, plain XLA) -------------------------
    # cbar[b,:] = ((sum_c cond[b,c,:]) @ W^T + Sc*bias) * scale
    csum = jnp.sum(cond.astype(jnp.float32), axis=1)               # (B, H)
    cbar = (csum @ w.astype(jnp.float32).T
            + jnp.float32(Sc) * b.astype(jnp.float32)) * jnp.float32(scale)
    cbar = cbar.reshape(B, 1, H).astype(compute_dtype)

    # ---- lane-dense padding + Sx tiling --------------------------------------
    tile_sx = max(128, (tile_sx // 128) * 128)
    tile = min(tile_sx, -(-Sx // 128) * 128)        # multiple of 128
    Sx_pad = -(-Sx // tile) * tile
    n_tiles = Sx_pad // tile
    if Sx_pad != Sx:
        x = jnp.pad(x, ((0, 0), (0, Sx_pad - Sx), (0, 0)))
        mask = jnp.pad(mask, ((0, 0), (0, Sx_pad - Sx)))   # pad slots mask==0

    # bf16 matmul operands halve HBM/VMEM traffic (f32 accumulation);
    # masking / top-k math stays f32 (v5e VPU has no bf16 arithmetic).
    xc = x.astype(compute_dtype)
    mask3 = mask.reshape(B, 1, Sx_pad).astype(jnp.float32)

    # ---- per-generation VMEM budget ------------------------------------------
    itemsize = jnp.dtype(compute_dtype).itemsize
    need = (2 * tile * H * itemsize          # x tiles, double-buffered
            + 2 * H * itemsize               # cbar block
            + 2 * tile * 4                   # mask block
            + 3 * Sx_pad * 4)                # out block (x2) + score scratch
    try:
        cap = int(pltpu.get_tpu_info().vmem_capacity_bytes)
    except Exception:                        # be conservative if query fails
        cap = 64 * 1024 * 1024               # v7x per-TC floor
    vmem_limit = int(min(max(2 * need, 16 * 1024 * 1024), int(cap * 0.75)))

    # TODO(synk): if topk exceeds the number of unmasked tokens the reference
    # produces NaNs (softmax of an all--inf row); this kernel instead selects
    # masked/padded slots — guard topk <= min unmasked count upstream.
    kernel = partial(router_kernel, tile=tile, topk=topk)
    out = pl.pallas_call(
        kernel,
        out_shape=jax.ShapeDtypeStruct((B, 1, Sx_pad), jnp.float32),
        grid_spec=pltpu.PrefetchScalarGridSpec(
            num_scalar_prefetch=0,
            grid=(B, n_tiles),
            in_specs=[
                pl.BlockSpec((1, 1, H),     lambda bi, ti: (bi, 0, 0)),  # cbar
                pl.BlockSpec((1, tile, H),  lambda bi, ti: (bi, ti, 0)), # x
                pl.BlockSpec((1, 1, tile),  lambda bi, ti: (bi, 0, ti)), # mask
            ],
            out_specs=pl.BlockSpec((1, 1, Sx_pad), lambda bi, ti: (bi, 0, 0)),
            scratch_shapes=[pltpu.VMEM((1, Sx_pad), jnp.float32)],
        ),
        compiler_params=pltpu.CompilerParams(
            # batch axis parallel (v7x megacore needs B>=2; single-batch
            # routing could split the score pass into its own parallel grid),
            # Sx axis is a carried accumulation -> arbitrary.
            dimension_semantics=("parallel", "arbitrary"),
            vmem_limit_bytes=vmem_limit,
        ),
    )(cbar, xc, mask3)
    return out.reshape(B, Sx_pad)[:, :Sx]


def router_reference(x, cond, mask, w, b, *, nheads, topk):
    """Plain-JAX mirror of the PyTorch module (for validation)."""
    B, Sx, H = x.shape
    hd = H // nheads
    c = cond @ w.T + b
    ch = c.reshape(B, -1, nheads, hd).transpose(0, 2, 1, 3)
    xh = x.reshape(B, Sx, nheads, hd).transpose(0, 2, 1, 3)
    s = jnp.einsum('bhcd,bhsd->bhcs', ch, xh) / math.sqrt(hd)
    score = s.mean(axis=1).mean(axis=1)
    score = jnp.where(mask == 0, -jnp.inf, score)
    gamma = jax.nn.softmax(score, axis=-1)
    idx = jnp.argsort(-gamma, axis=-1)[:, :topk]
    out = jnp.zeros((B, Sx), jnp.float32)
    out = out.at[jnp.arange(B)[:, None], idx].set(1.0)
    return out


if __name__ == "__main__":
    def run_case(B, Sx, Sc, H, nheads, topk, tile_sx):
        key = jax.random.PRNGKey(0)
        kx, kc, kw, kb = jax.random.split(key, 4)
        x = jax.random.normal(kx, (B, Sx, H), dtype=jnp.float32)
        cond = jax.random.normal(kc, (B, Sc, H), dtype=jnp.float32)
        w = jax.random.normal(kw, (H, H), dtype=jnp.float32) / math.sqrt(H)
        b = jax.random.normal(kb, (H,), dtype=jnp.float32) * 0.01
        mask = jnp.ones((B, Sx), dtype=jnp.float32)
        mask = mask.at[:, 3].set(0.0).at[:, Sx - 4].set(0.0)

        ref = router_reference(x, cond, mask, w, b, nheads=nheads, topk=topk)

        # exact check against the PyTorch-equivalent reference (f32 MXU path)
        out = jax.block_until_ready(
            router_forward(x, cond, mask, w, b, nheads=nheads, topk=topk,
                           compute_dtype=jnp.float32, tile_sx=tile_sx))
        assert out.shape == (B, Sx)
        assert jnp.array_equal(out, ref), (out, ref)
        assert jnp.all(jnp.sum(out, axis=-1) == topk)

        # production low-precision path (bf16 MXU operands, f32 accumulation)
        out_bf16 = jax.block_until_ready(
            router_forward(x, cond, mask, w, b, nheads=nheads, topk=topk,
                           compute_dtype=jnp.bfloat16, tile_sx=tile_sx))
        assert out_bf16.shape == (B, Sx)
        assert jnp.all(jnp.sum(out_bf16, axis=-1) == topk)
        assert jnp.all(out_bf16 * (mask == 0) == 0)  # never selects masked

    # RouterBase(hidden_size=32, k=10, nheads=2) — single-tile path
    run_case(B=2, Sx=16, Sc=8, H=32, nheads=2, topk=10, tile_sx=512)
    # multi-Sx-tile path (2 tiles of 128) exercising the score accumulator
    run_case(B=2, Sx=160, Sc=8, H=32, nheads=2, topk=10, tile_sx=128)

    print("KERNEL_OK")
</pallas_src>

<mosaic_0001>
module attributes {stable_mosaic.version = 11 : i64} {
  func.func @router_kernel(%arg0: i32, %arg1: i32, %arg2: memref<1x1x32xf32, #tpu.memory_space<vmem>>, %arg3: memref<1x128x32xf32, #tpu.memory_space<vmem>>, %arg4: memref<1x1x128xf32, #tpu.memory_space<vmem>>, %arg5: memref<1x1x128xf32, #tpu.memory_space<vmem>>, %arg6: memref<1x128xf32, #tpu.memory_space<vmem>>) attributes {dimension_semantics = [#tpu.dimension_semantics<parallel>, #tpu.dimension_semantics<arbitrary>], iteration_bounds = array<i64: 2, 1>, scalar_prefetch = 0 : i64, scratch_operands = 1 : i64, tpu.core_type = #tpu.core_type<tc>, window_params = [{transform_indices = @transform_0, window_bounds = array<i64: 1, 1, 32>}, {transform_indices = @transform_1, window_bounds = array<i64: 1, 128, 32>}, {transform_indices = @transform_2, window_bounds = array<i64: 1, 1, 128>}, {transform_indices = @transform_3, window_bounds = array<i64: 1, 1, 128>}]} {
    %c0 = arith.constant 0 : index
    %c0_0 = arith.constant 0 : index
    %c0_1 = arith.constant 0 : index
    %0 = vector.load %arg3[%c0, %c0_0, %c0_1] : memref<1x128x32xf32, #tpu.memory_space<vmem>>, vector<1x128x32xf32>
    %1 = vector.shape_cast %0 : vector<1x128x32xf32> to vector<128x32xf32>
    %c0_2 = arith.constant 0 : index
    %c0_3 = arith.constant 0 : index
    %c0_4 = arith.constant 0 : index
    %2 = vector.load %arg2[%c0_2, %c0_3, %c0_4] : memref<1x1x32xf32, #tpu.memory_space<vmem>>, vector<1x1x32xf32>
    %3 = vector.shape_cast %2 : vector<1x1x32xf32> to vector<1x32xf32>
    %cst = arith.constant dense<0.000000e+00> : vector<1x128xf32>
    %4 = tpu.matmul %3, %1, %cst {dimension_numbers = #tpu.dot_dimension_numbers<[1], [1], [0], [0], [0, 0, 1, 0], [], []>} : vector<1x32xf32>, vector<128x32xf32>, vector<1x128xf32> -> vector<1x128xf32>
    %c0_5 = arith.constant 0 : index
    %c0_6 = arith.constant 0 : index
    %c0_7 = arith.constant 0 : index
    %5 = vector.load %arg4[%c0_5, %c0_6, %c0_7] : memref<1x1x128xf32, #tpu.memory_space<vmem>>, vector<1x1x128xf32>
    %6 = vector.shape_cast %5 : vector<1x1x128xf32> to vector<1x128xf32>
    %cst_8 = arith.constant 0.000000e+00 : f32
    %7 = vector.broadcast %cst_8 : f32 to vector<1x128xf32>
    %8 = arith.cmpf oeq, %6, %7 : vector<1x128xf32>
    %cst_9 = arith.constant -1.000000e+30 : f32
    %9 = vector.broadcast %cst_9 : f32 to vector<1x128xf32>
    %10 = arith.select %8, %9, %4 : vector<1x128xi1>, vector<1x128xf32>
    %c128_i32 = arith.constant 128 : i32
    %11 = arith.muli %arg1, %c128_i32 : i32
    %12 = tpu.assume_multiple %11, 128 : i32
    %c0_10 = arith.constant 0 : index
    %13 = arith.index_cast %12 : i32 to index
    %14 = vector.load %arg6[%c0_10, %13] : memref<1x128xf32, #tpu.memory_space<vmem>>, vector<1x128xf32>
    tpu.vector_store %arg6[%c0_10, %13], %10 {strides = array<i32>} : memref<1x128xf32, #tpu.memory_space<vmem>>, vector<1x128xf32>,
    %c0_i32 = arith.constant 0 : i32
    %15 = arith.cmpi eq, %arg1, %c0_i32 : i32
    %16 = arith.extui %15 : i1 to i32
    %c0_i32_11 = arith.constant 0 : i32
    %17 = arith.cmpi ne, %16, %c0_i32_11 : i32
    scf.if %17 {
      %c0_12 = arith.constant 0 : index
      %c0_13 = arith.constant 0 : index
      %18 = vector.load %arg6[%c0_12, %c0_13] : memref<1x128xf32, #tpu.memory_space<vmem>>, vector<1x128xf32>
      %19 = tpu.iota {dimensions = array<i32: 1>} : vector<1x128xi32>
      %cst_14 = arith.constant 0.000000e+00 : f32
      %20 = vector.broadcast %cst_14 : f32 to vector<1x128xf32>
      %cst_15 = arith.constant dense<0xFF800000> : vector<1xf32>
      %21 = vector.multi_reduction <maximumf>, %18, %cst_15 [1] : vector<1x128xf32> to vector<1xf32>
      %22 = vector.shape_cast %21 : vector<1xf32> to vector<1x1xf32>
      %23 = vector.broadcast %22 : vector<1x1xf32> to vector<1x128xf32>
      %24 = arith.cmpf oeq, %18, %23 : vector<1x128xf32>
      %c128_i32_16 = arith.constant 128 : i32
      %25 = vector.broadcast %c128_i32_16 : i32 to vector<1x128xi32>
      %26 = arith.select %24, %19, %25 : vector<1x128xi1>, vector<1x128xi32>
      %cst_17 = arith.constant dense<2147483647> : vector<1xi32>
      %27 = vector.multi_reduction <minsi>, %26, %cst_17 [1] : vector<1x128xi32> to vector<1xi32>
      %28 = vector.shape_cast %27 : vector<1xi32> to vector<1x1xi32>
      %29 = vector.broadcast %28 : vector<1x1xi32> to vector<1x128xi32>
      %30 = arith.cmpi eq, %19, %29 : vector<1x128xi32>
      %cst_18 = arith.constant 1.000000e+00 : f32
      %31 = vector.broadcast %cst_18 : f32 to vector<1x128xf32>
      %32 = arith.select %30, %31, %20 : vector<1x128xi1>, vector<1x128xf32>
      %cst_19 = arith.constant 0xFF800000 : f32
      %33 = vector.broadcast %cst_19 : f32 to vector<1x128xf32>
      %34 = arith.select %30, %33, %18 : vector<1x128xi1>, vector<1x128xf32>
      %cst_20 = arith.constant dense<0xFF800000> : vector<1xf32>
      %35 = vector.multi_reduction <maximumf>, %34, %cst_20 [1] : vector<1x128xf32> to vector<1xf32>
      %36 = vector.shape_cast %35 : vector<1xf32> to vector<1x1xf32>
      %37 = vector.broadcast %36 : vector<1x1xf32> to vector<1x128xf32>
      %38 = arith.cmpf oeq, %34, %37 : vector<1x128xf32>
      %c128_i32_21 = arith.constant 128 : i32
      %39 = vector.broadcast %c128_i32_21 : i32 to vector<1x128xi32>
      %40 = arith.select %38, %19, %39 : vector<1x128xi1>, vector<1x128xi32>
      %cst_22 = arith.constant dense<2147483647> : vector<1xi32>
      %41 = vector.multi_reduction <minsi>, %40, %cst_22 [1] : vector<1x128xi32> to vector<1xi32>
      %42 = vector.shape_cast %41 : vector<1xi32> to vector<1x1xi32>
      %43 = vector.broadcast %42 : vector<1x1xi32> to vector<1x128xi32>
      %44 = arith.cmpi eq, %19, %43 : vector<1x128xi32>
      %cst_23 = arith.constant 1.000000e+00 : f32
      %45 = vector.broadcast %cst_23 : f32 to vector<1x128xf32>
      %46 = arith.select %44, %45, %32 : vector<1x128xi1>, vector<1x128xf32>
      %cst_24 = arith.constant 0xFF800000 : f32
      %47 = vector.broadcast %cst_24 : f32 to vector<1x128xf32>
      %48 = arith.select %44, %47, %34 : vector<1x128xi1>, vector<1x128xf32>
      %cst_25 = arith.constant dense<0xFF800000> : vector<1xf32>
      %49 = vector.multi_reduction <maximumf>, %48, %cst_25 [1] : vector<1x128xf32> to vector<1xf32>
      %50 = vector.shape_cast %49 : vector<1xf32> to vector<1x1xf32>
      %51 = vector.broadcast %50 : vector<1x1xf32> to vector<1x128xf32>
      %52 = arith.cmpf oeq, %48, %51 : vector<1x128xf32>
      %c128_i32_26 = arith.constant 128 : i32
      %53 = vector.broadcast %c128_i32_26 : i32 to vector<1x128xi32>
      %54 = arith.select %52, %19, %53 : vector<1x128xi1>, vector<1x128xi32>
      %cst_27 = arith.constant dense<2147483647> : vector<1xi32>
      %55 = vector.multi_reduction <minsi>, %54, %cst_27 [1] : vector<1x128xi32> to vector<1xi32>
      %56 = vector.shape_cast %55 : vector<1xi32> to vector<1x1xi32>
      %57 = vector.broadcast %56 : vector<1x1xi32> to vector<1x128xi32>
      %58 = arith.cmpi eq, %19, %57 : vector<1x128xi32>
      %cst_28 = arith.constant 1.000000e+00 : f32
      %59 = vector.broadcast %cst_28 : f32 to vector<1x128xf32>
      %60 = arith.select %58, %59, %46 : vector<1x128xi1>, vector<1x128xf32>
      %cst_29 = arith.constant 0xFF800000 : f32
      %61 = vector.broadcast %cst_29 : f32 to vector<1x128xf32>
      %62 = arith.select %58, %61, %48 : vector<1x128xi1>, vector<1x128xf32>
      %cst_30 = arith.constant dense<0xFF800000> : vector<1xf32>
      %63 = vector.multi_reduction <maximumf>, %62, %cst_30 [1] : vector<1x128xf32> to vector<1xf32>
      %64 = vector.shape_cast %63 : vector<1xf32> to vector<1x1xf32>
      %65 = vector.broadcast %64 : vector<1x1xf32> to vector<1x128xf32>
      %66 = arith.cmpf oeq, %62, %65 : vector<1x128xf32>
      %c128_i32_31 = arith.constant 128 : i32
      %67 = vector.broadcast %c128_i32_31 : i32 to vector<1x128xi32>
      %68 = arith.select %66, %19, %67 : vector<1x128xi1>, vector<1x128xi32>
      %cst_32 = arith.constant dense<2147483647> : vector<1xi32>
      %69 = vector.multi_reduction <minsi>, %68, %cst_32 [1] : vector<1x128xi32> to vector<1xi32>
      %70 = vector.shape_cast %69 : vector<1xi32> to vector<1x1xi32>
      %71 = vector.broadcast %70 : vector<1x1xi32> to vector<1x128xi32>
      %72 = arith.cmpi eq, %19, %71 : vector<1x128xi32>
      %cst_33 = arith.constant 1.000000e+00 : f32
      %73 = vector.broadcast %cst_33 : f32 to vector<1x128xf32>
      %74 = arith.select %72, %73, %60 : vector<1x128xi1>, vector<1x128xf32>
      %cst_34 = arith.constant 0xFF800000 : f32
      %75 = vector.broadcast %cst_34 : f32 to vector<1x128xf32>
      %76 = arith.select %72, %75, %62 : vector<1x128xi1>, vector<1x128xf32>
      %cst_35 = arith.constant dense<0xFF800000> : vector<1xf32>
      %77 = vector.multi_reduction <maximumf>, %76, %cst_35 [1] : vector<1x128xf32> to vector<1xf32>
      %78 = vector.shape_cast %77 : vector<1xf32> to vector<1x1xf32>
      %79 = vector.broadcast %78 : vector<1x1xf32> to vector<1x128xf32>
      %80 = arith.cmpf oeq, %76, %79 : vector<1x128xf32>
      %c128_i32_36 = arith.constant 128 : i32
      %81 = vector.broadcast %c128_i32_36 : i32 to vector<1x128xi32>
      %82 = arith.select %80, %19, %81 : vector<1x128xi1>, vector<1x128xi32>
      %cst_37 = arith.constant dense<2147483647> : vector<1xi32>
      %83 = vector.multi_reduction <minsi>, %82, %cst_37 [1] : vector<1x128xi32> to vector<1xi32>
      %84 = vector.shape_cast %83 : vector<1xi32> to vector<1x1xi32>
      %85 = vector.broadcast %84 : vector<1x1xi32> to vector<1x128xi32>
      %86 = arith.cmpi eq, %19, %85 : vector<1x128xi32>
      %cst_38 = arith.constant 1.000000e+00 : f32
      %87 = vector.broadcast %cst_38 : f32 to vector<1x128xf32>
      %88 = arith.select %86, %87, %74 : vector<1x128xi1>, vector<1x128xf32>
      %cst_39 = arith.constant 0xFF800000 : f32
      %89 = vector.broadcast %cst_39 : f32 to vector<1x128xf32>
      %90 = arith.select %86, %89, %76 : vector<1x128xi1>, vector<1x128xf32>
      %cst_40 = arith.constant dense<0xFF800000> : vector<1xf32>
      %91 = vector.multi_reduction <maximumf>, %90, %cst_40 [1] : vector<1x128xf32> to vector<1xf32>
      %92 = vector.shape_cast %91 : vector<1xf32> to vector<1x1xf32>
      %93 = vector.broadcast %92 : vector<1x1xf32> to vector<1x128xf32>
      %94 = arith.cmpf oeq, %90, %93 : vector<1x128xf32>
      %c128_i32_41 = arith.constant 128 : i32
      %95 = vector.broadcast %c128_i32_41 : i32 to vector<1x128xi32>
      %96 = arith.select %94, %19, %95 : vector<1x128xi1>, vector<1x128xi32>
      %cst_42 = arith.constant dense<2147483647> : vector<1xi32>
      %97 = vector.multi_reduction <minsi>, %96, %cst_42 [1] : vector<1x128xi32> to vector<1xi32>
      %98 = vector.shape_cast %97 : vector<1xi32> to vector<1x1xi32>
      %99 = vector.broadcast %98 : vector<1x1xi32> to vector<1x128xi32>
      %100 = arith.cmpi eq, %19, %99 : vector<1x128xi32>
      %cst_43 = arith.constant 1.000000e+00 : f32
      %101 = vector.broadcast %cst_43 : f32 to vector<1x128xf32>
      %102 = arith.select %100, %101, %88 : vector<1x128xi1>, vector<1x128xf32>
      %cst_44 = arith.constant 0xFF800000 : f32
      %103 = vector.broadcast %cst_44 : f32 to vector<1x128xf32>
      %104 = arith.select %100, %103, %90 : vector<1x128xi1>, vector<1x128xf32>
      %cst_45 = arith.constant dense<0xFF800000> : vector<1xf32>
      %105 = vector.multi_reduction <maximumf>, %104, %cst_45 [1] : vector<1x128xf32> to vector<1xf32>
      %106 = vector.shape_cast %105 : vector<1xf32> to vector<1x1xf32>
      %107 = vector.broadcast %106 : vector<1x1xf32> to vector<1x128xf32>
      %108 = arith.cmpf oeq, %104, %107 : vector<1x128xf32>
      %c128_i32_46 = arith.constant 128 : i32
      %109 = vector.broadcast %c128_i32_46 : i32 to vector<1x128xi32>
      %110 = arith.select %108, %19, %109 : vector<1x128xi1>, vector<1x128xi32>
      %cst_47 = arith.constant dense<2147483647> : vector<1xi32>
      %111 = vector.multi_reduction <minsi>, %110, %cst_47 [1] : vector<1x128xi32> to vector<1xi32>
      %112 = vector.shape_cast %111 : vector<1xi32> to vector<1x1xi32>
      %113 = vector.broadcast %112 : vector<1x1xi32> to vector<1x128xi32>
      %114 = arith.cmpi eq, %19, %113 : vector<1x128xi32>
      %cst_48 = arith.constant 1.000000e+00 : f32
      %115 = vector.broadcast %cst_48 : f32 to vector<1x128xf32>
      %116 = arith.select %114, %115, %102 : vector<1x128xi1>, vector<1x128xf32>
      %cst_49 = arith.constant 0xFF800000 : f32
      %117 = vector.broadcast %cst_49 : f32 to vector<1x128xf32>
      %118 = arith.select %114, %117, %104 : vector<1x128xi1>, vector<1x128xf32>
      %cst_50 = arith.constant dense<0xFF800000> : vector<1xf32>
      %119 = vector.multi_reduction <maximumf>, %118, %cst_50 [1] : vector<1x128xf32> to vector<1xf32>
      %120 = vector.shape_cast %119 : vector<1xf32> to vector<1x1xf32>
      %121 = vector.broadcast %120 : vector<1x1xf32> to vector<1x128xf32>
      %122 = arith.cmpf oeq, %118, %121 : vector<1x128xf32>
      %c128_i32_51 = arith.constant 128 : i32
      %123 = vector.broadcast %c128_i32_51 : i32 to vector<1x128xi32>
      %124 = arith.select %122, %19, %123 : vector<1x128xi1>, vector<1x128xi32>
      %cst_52 = arith.constant dense<2147483647> : vector<1xi32>
      %125 = vector.multi_reduction <minsi>, %124, %cst_52 [1] : vector<1x128xi32> to vector<1xi32>
      %126 = vector.shape_cast %125 : vector<1xi32> to vector<1x1xi32>
      %127 = vector.broadcast %126 : vector<1x1xi32> to vector<1x128xi32>
      %128 = arith.cmpi eq, %19, %127 : vector<1x128xi32>
      %cst_53 = arith.constant 1.000000e+00 : f32
      %129 = vector.broadcast %cst_53 : f32 to vector<1x128xf32>
      %130 = arith.select %128, %129, %116 : vector<1x128xi1>, vector<1x128xf32>
      %cst_54 = arith.constant 0xFF800000 : f32
      %131 = vector.broadcast %cst_54 : f32 to vector<1x128xf32>
      %132 = arith.select %128, %131, %118 : vector<1x128xi1>, vector<1x128xf32>
      %cst_55 = arith.constant dense<0xFF800000> : vector<1xf32>
      %133 = vector.multi_reduction <maximumf>, %132, %cst_55 [1] : vector<1x128xf32> to vector<1xf32>
      %134 = vector.shape_cast %133 : vector<1xf32> to vector<1x1xf32>
      %135 = vector.broadcast %134 : vector<1x1xf32> to vector<1x128xf32>
      %136 = arith.cmpf oeq, %132, %135 : vector<1x128xf32>
      %c128_i32_56 = arith.constant 128 : i32
      %137 = vector.broadcast %c128_i32_56 : i32 to vector<1x128xi32>
      %138 = arith.select %136, %19, %137 : vector<1x128xi1>, vector<1x128xi32>
      %cst_57 = arith.constant dense<2147483647> : vector<1xi32>
      %139 = vector.multi_reduction <minsi>, %138, %cst_57 [1] : vector<1x128xi32> to vector<1xi32>
      %140 = vector.shape_cast %139 : vector<1xi32> to vector<1x1xi32>
      %141 = vector.broadcast %140 : vector<1x1xi32> to vector<1x128xi32>
      %142 = arith.cmpi eq, %19, %141 : vector<1x128xi32>
      %cst_58 = arith.constant 1.000000e+00 : f32
      %143 = vector.broadcast %cst_58 : f32 to vector<1x128xf32>
      %144 = arith.select %142, %143, %130 : vector<1x128xi1>, vector<1x128xf32>
      %cst_59 = arith.constant 0xFF800000 : f32
      %145 = vector.broadcast %cst_59 : f32 to vector<1x128xf32>
      %146 = arith.select %142, %145, %132 : vector<1x128xi1>, vector<1x128xf32>
      %cst_60 = arith.constant dense<0xFF800000> : vector<1xf32>
      %147 = vector.multi_reduction <maximumf>, %146, %cst_60 [1] : vector<1x128xf32> to vector<1xf32>
      %148 = vector.shape_cast %147 : vector<1xf32> to vector<1x1xf32>
      %149 = vector.broadcast %148 : vector<1x1xf32> to vector<1x128xf32>
      %150 = arith.cmpf oeq, %146, %149 : vector<1x128xf32>
      %c128_i32_61 = arith.constant 128 : i32
      %151 = vector.broadcast %c128_i32_61 : i32 to vector<1x128xi32>
      %152 = arith.select %150, %19, %151 : vector<1x128xi1>, vector<1x128xi32>
      %cst_62 = arith.constant dense<2147483647> : vector<1xi32>
      %153 = vector.multi_reduction <minsi>, %152, %cst_62 [1] : vector<1x128xi32> to vector<1xi32>
      %154 = vector.shape_cast %153 : vector<1xi32> to vector<1x1xi32>
      %155 = vector.broadcast %154 : vector<1x1xi32> to vector<1x128xi32>
      %156 = arith.cmpi eq, %19, %155 : vector<1x128xi32>
      %cst_63 = arith.constant 1.000000e+00 : f32
      %157 = vector.broadcast %cst_63 : f32 to vector<1x128xf32>
      %158 = arith.select %156, %157, %144 : vector<1x128xi1>, vector<1x128xf32>
      %159 = vector.shape_cast %158 : vector<1x128xf32> to vector<1x1x128xf32>
      %c0_64 = arith.constant 0 : index
      %c0_65 = arith.constant 0 : index
      %c0_66 = arith.constant 0 : index
      %160 = vector.load %arg5[%c0_64, %c0_65, %c0_66] : memref<1x1x128xf32, #tpu.memory_space<vmem>>, vector<1x1x128xf32>
      tpu.vector_store %arg5[%c0_64, %c0_65, %c0_66], %159 {strides = array<i32>} : memref<1x1x128xf32, #tpu.memory_space<vmem>>, vector<1x1x128xf32>,
    } else {
    }
    return
  }
  func.func @transform_0(%arg0: i32, %arg1: i32) -> (i32, i32, i32) {
    %c0_i32 = arith.constant 0 : i32
    %c0_i32_0 = arith.constant 0 : i32
    %c0_i32_1 = arith.constant 0 : i32
    return %arg0, %c0_i32, %c0_i32_0 : i32, i32, i32
  }
  func.func @transform_1(%arg0: i32, %arg1: i32) -> (i32, i32, i32) {
    %c0_i32 = arith.constant 0 : i32
    %c0_i32_0 = arith.constant 0 : i32
    return %arg0, %arg1, %c0_i32 : i32, i32, i32
  }
  func.func @transform_2(%arg0: i32, %arg1: i32) -> (i32, i32, i32) {
    %c0_i32 = arith.constant 0 : i32
    %c0_i32_0 = arith.constant 0 : i32
    return %arg0, %c0_i32, %arg1 : i32, i32, i32
  }
  func.func @transform_3(%arg0: i32, %arg1: i32) -> (i32, i32, i32) {
    %c0_i32 = arith.constant 0 : i32
    %c0_i32_0 = arith.constant 0 : i32
    %c0_i32_1 = arith.constant 0 : i32
    return %arg0, %c0_i32, %c0_i32_0 : i32, i32, i32
  }
}

</mosaic_0001>

<llo_original>
// kernel: tpu_custom_call.1
$region0: #{tpu_custom_call.1}
  #allocation0 [shape = 'u32[]', space=smem, size = 0x4, offset = 0x4, fixed_abs, tag = 'smem constant byte address 0x4 - core index']
  #allocation1 [shape = 'u32[72,128]{1,0:T(1,128)}', space=vmem, size = 0x9000, scoped, tag = 'internal scratch']
  #allocation2 [shape = 'f32[1,128]{1,0:T(1,128)}', space=vmem, size = 0x200, scoped, tag = 'scratch operand']
  %s0 = inlined_call_operand.vmem [shape: f32[2,1,32], index: 0, kind: input, shape index: {}]
  %s1 = inlined_call_operand.vmem [shape: f32[2,128,32], index: 1, kind: input, shape index: {}]
  %s2 = inlined_call_operand.vmem [shape: f32[2,1,128], index: 2, kind: input, shape index: {}]
  %s3 = inlined_call_operand.hbm [shape: f32[2,1,128], index: 3, kind: output, shape index: {}]
  %s4 = sld [smem:[#allocation0]]
  $region49: #{tpu_custom_call.1} parent=0
    _
  %s6 = ssub.s32 1, %s4
  %s7 = scalar_select 0, %s6, %s4
  $region1: #{tpu_custom_call.1} parent=0
    #allocation3 [shape = 'u8[1024]{0}', space=vmem, size = 0x400, scoped, tag = 'output window, operand 0']
    #allocation4 [shape = 's32[2]{0}', space=sflag, size = 0x8, scoped, tag = 'scoped memory for tpu_custom_call.1']
    %8 = vsyncpa [#allocation4], 0
    %s9 = scalar_lea.sflag [#allocation4], 1
    %10 = vsyncpa %s9, 0
    loop: start=0, step=1, limit=4
    $region2: #{tpu_custom_call.1} parent=1 // loop_pre_header
      _
    $region3: #{tpu_custom_call.1} parent=1 // loop_header
      %s12 = sphi 0, %s16
      %p13 = scmp.ge.s32.totalorder %s12, 4
      %s19 = sphi 0, %s31
      %s20 = sphi 0, %s27
      %s21 = sphi 0, %s19
      %s22 = sphi 0, %s20
      %s23 = sphi 0, %s21
      %s24 = sphi 0, %s22
      %s34 = sphi 0, %s36
      %s37 = sphi 0, %s34
      %s38 = sphi 0, %s37
      %s54 = sphi 0, %s38
      %s62 = sphi 0, %s64
      %s65 = sphi 0, %s62
      %s66 = sphi 0, %s65
      %s82 = sphi 0, %s66
      %s90 = sphi 0, %s92
      %s93 = sphi 0, %s90
      %s94 = sphi 0, %s93
      %s110 = sphi 0, %s94
      %s116 = sphi 0, %s118
      %s119 = sphi 0, %s116
      %s120 = sphi 0, %s119
      %s136 = sphi 0, %s120
    $region4: #{tpu_custom_call.1} parent=1 // loop_header_branch
      %15 = sbr.rel (%p13) target = $region8
    $region5: #{tpu_custom_call.1} parent=1 // loop_body
      %s17 = ssub.s32 %s12, 1
      %s18 = ssub.s32 %s12, 2
      %s25 = sadd.s32 1, %s20
      %p26 = scmp.ge.s32.totalorder %s25, 1
      %s27 = scalar_select %p26, 0, %s25
      %s28 = sadd.s32 1, %s19
      %s29 = scalar_select %p26, %s28, %s19
      %p30 = scmp.ge.s32.totalorder %s29, 2
      %s31 = scalar_select %p30, 0, %s29
      %s32 = ssub.s32 %s19, %s31
      %p33 = scmp.eq.s32.totalorder %s32, 0
      %s35 = sadd.s32 %s34, 1
      %s36 = scalar_select %p33, %s34, %s35
      %p39 = pneg %p33
      %p40 = scmp.eq.s32.totalorder %s12, 1
      %p41 = por %p39, %p40
      %p42 = scmp.ne.s32.totalorder %s34, %s37
      %p43 = scmp.eq.s32.totalorder %s12, 0
      %p44 = por %p42, %p43
      %p45 = scmp.ne.s32.totalorder %s34, %s37
      %p46 = scmp.eq.s32.totalorder %s17, 1
      %p47 = por %p45, %p46
      %p48 = scmp.ne.s32.totalorder %s37, %s38
      %p49 = scmp.eq.s32.totalorder %s17, 0
      %p50 = por %p48, %p49
      %p51 = scmp.ne.s32.totalorder %s37, %s38
      %p52 = scmp.eq.s32.totalorder %s18, 1
      %p53 = por %p51, %p52
      %p55 = scmp.ne.s32.totalorder %s38, %s54
      %p56 = scmp.eq.s32.totalorder %s18, 0
      %p57 = por %p55, %p56
      %s58 = ssub.s32 %s19, %s31
      %s59 = ssub.s32 %s20, %s27
      %s60 = sor.u32 %s58, %s59
      %p61 = scmp.eq.s32.totalorder %s60, 0
      %s63 = sadd.s32 %s62, 1
      %s64 = scalar_select %p61, %s62, %s63
      %p67 = pneg %p61
      %p68 = scmp.eq.s32.totalorder %s12, 1
      %p69 = por %p67, %p68
      %p70 = scmp.ne.s32.totalorder %s62, %s65
      %p71 = scmp.eq.s32.totalorder %s12, 0
      %p72 = por %p70, %p71
      %p73 = scmp.ne.s32.totalorder %s62, %s65
      %p74 = scmp.eq.s32.totalorder %s17, 1
      %p75 = por %p73, %p74
      %p76 = scmp.ne.s32.totalorder %s65, %s66
      %p77 = scmp.eq.s32.totalorder %s17, 0
      %p78 = por %p76, %p77
      %p79 = scmp.ne.s32.totalorder %s65, %s66
      %p80 = scmp.eq.s32.totalorder %s18, 1
      %p81 = por %p79, %p80
      %p83 = scmp.ne.s32.totalorder %s66, %s82
      %p84 = scmp.eq.s32.totalorder %s18, 0
      %p85 = por %p83, %p84
      %s86 = ssub.s32 %s19, %s31
      %s87 = ssub.s32 %s20, %s27
      %s88 = sor.u32 %s86, %s87
      %p89 = scmp.eq.s32.totalorder %s88, 0
      %s91 = sadd.s32 %s90, 1
      %s92 = scalar_select %p89, %s90, %s91
      %p95 = pneg %p89
      %p96 = scmp.eq.s32.totalorder %s12, 1
      %p97 = por %p95, %p96
      %p98 = scmp.ne.s32.totalorder %s90, %s93
      %p99 = scmp.eq.s32.totalorder %s12, 0
      %p100 = por %p98, %p99
      %p101 = scmp.ne.s32.totalorder %s90, %s93
      %p102 = scmp.eq.s32.totalorder %s17, 1
      %p103 = por %p101, %p102
      %p104 = scmp.ne.s32.totalorder %s93, %s94
      %p105 = scmp.eq.s32.totalorder %s17, 0
      %p106 = por %p104, %p105
      %p107 = scmp.ne.s32.totalorder %s93, %s94
      %p108 = scmp.eq.s32.totalorder %s18, 1
      %p109 = por %p107, %p108
      %p111 = scmp.ne.s32.totalorder %s94, %s110
      %p112 = scmp.eq.s32.totalorder %s18, 0
      %p113 = por %p111, %p112
      %s114 = ssub.s32 %s19, %s31
      %p115 = scmp.eq.s32.totalorder %s114, 0
      %s117 = sadd.s32 %s116, 1
      %s118 = scalar_select %p115, %s116, %s117
      %p121 = pneg %p115
      %p122 = scmp.eq.s32.totalorder %s12, 1
      %p123 = por %p121, %p122
      %p124 = scmp.ne.s32.totalorder %s116, %s119
      %p125 = scmp.eq.s32.totalorder %s12, 0
      %p126 = por %p124, %p125
      %p127 = scmp.ne.s32.totalorder %s116, %s119
      %p128 = scmp.eq.s32.totalorder %s17, 1
      %p129 = por %p127, %p128
      %p130 = scmp.ne.s32.totalorder %s119, %s120
      %p131 = scmp.eq.s32.totalorder %s17, 0
      %p132 = por %p130, %p131
      %p133 = scmp.ne.s32.totalorder %s119, %s120
      %p134 = scmp.eq.s32.totalorder %s18, 1
      %p135 = por %p133, %p134
      %p137 = scmp.ne.s32.totalorder %s120, %s136
      %p138 = scmp.eq.s32.totalorder %s18, 0
      %p139 = por %p137, %p138
      %p140 = scmp.le.s32.totalorder 1, %s12
      %p141 = scmp.lt.s32.totalorder %s12, 3
      %p142 = pnand %p140, %p141
      %p143 = pneg %p142
      // Predicated region
      $region9: #{tpu_custom_call.1} parent=5 // pred_check
        _
      $region10: #{tpu_custom_call.1} parent=5 // pred_check_branch
        %145 = sbr.rel (%p142) target = $region12
      $region11: #{tpu_custom_call.1} parent=5 // pred_region
        %s146 = ssub.s32 %s12, 1
      $region12: #{tpu_custom_call.1} parent=5 // pred_fallthru
        _
      %p147 = scmp.lt.s32.totalorder %s12, 2
      // Predicated region
      $region13: #{tpu_custom_call.1} parent=5 // pred_check
        %p148 = pneg %p147
      $region14: #{tpu_custom_call.1} parent=5 // pred_check_branch
        %150 = sbr.rel (%p148) target = $region16
      $region15: #{tpu_custom_call.1} parent=5 // pred_region
        // Predicated region
        $region17: #{tpu_custom_call.1} parent=15 // pred_check
          %p151 = pneg %p44
        $region18: #{tpu_custom_call.1} parent=15 // pred_check_branch
          %153 = sbr.rel (%p151) target = $region20
        $region19: #{tpu_custom_call.1} parent=15 // pred_region
          %p154 = scmp.lt.s32.totalorder %s19, 1
          %s155 = scalar_select %p154, %s19, 1
          %s156 = scalar_lea.vmem %s0, %s155
        $region20: #{tpu_custom_call.1} parent=15 // pred_fallthru
          _
        // Predicated region
        $region21: #{tpu_custom_call.1} parent=15 // pred_check
          %p157 = pneg %p72
        $region22: #{tpu_custom_call.1} parent=15 // pred_check_branch
          %159 = sbr.rel (%p157) target = $region24
        $region23: #{tpu_custom_call.1} parent=15 // pred_region
          %s160 = smul.u32 16, %s20
          %p161 = scmp.lt.s32.totalorder %s19, 1
          %s162 = scalar_select %p161, %s19, 1
          %p163 = scmp.lt.s32.totalorder %s160, 15
          %s164 = scalar_select %p163, %s160, 15
          %s165 = smul.addr %s162, 16
          %s166 = sadd.s32 %s164, %s165
          %s167 = smul.addr %s166, 8
          %s168 = scalar_lea.vmem %s1, %s167
          %s169 = smul.u32 16, %s20
        $region24: #{tpu_custom_call.1} parent=15 // pred_fallthru
          _
        // Predicated region
        $region25: #{tpu_custom_call.1} parent=15 // pred_check
          %p170 = pneg %p100
        $region26: #{tpu_custom_call.1} parent=15 // pred_check_branch
          %172 = sbr.rel (%p170) target = $region28
        $region27: #{tpu_custom_call.1} parent=15 // pred_region
          %p173 = scmp.lt.s32.totalorder %s19, 1
          %s174 = scalar_select %p173, %s19, 1
          %p175 = scmp.lt.s32.totalorder %s20, 0
          %s176 = scalar_select %p175, %s20, 0
          %s177 = sadd.s32 %s176, %s174
          %s178 = scalar_lea.vmem %s2, %s177
        $region28: #{tpu_custom_call.1} parent=15 // pred_fallthru
          _
      $region16: #{tpu_custom_call.1} parent=5 // pred_fallthru
        _
      %p179 = scmp.le.s32.totalorder 1, %s12
      %p180 = scmp.lt.s32.totalorder %s12, 3
      %p181 = pnand %p179, %p180
      %p182 = pneg %p181
      // Predicated region
      $region29: #{tpu_custom_call.1} parent=5 // pred_check
        _
      $region30: #{tpu_custom_call.1} parent=5 // pred_check_branch
        %184 = sbr.rel (%p181) target = $region32
      $region31: #{tpu_custom_call.1} parent=5 // pred_region
        %s185 = ssub.s32 %s12, 1
        %p186 = scmp.lt.s32.totalorder %s21, 1
        %s187 = scalar_select %p186, %s21, 1
        %s188 = scalar_lea.vmem %s0, %s187
        %p189 = pneg %p50
        %p190 = pneg %p47
        %s191 = smul.u32 16, %s22
        %p192 = scmp.lt.s32.totalorder %s21, 1
        %s193 = scalar_select %p192, %s21, 1
        %p194 = scmp.lt.s32.totalorder %s191, 15
        %s195 = scalar_select %p194, %s191, 15
        %s196 = smul.addr %s193, 16
        %s197 = sadd.s32 %s195, %s196
        %s198 = smul.addr %s197, 8
        %s199 = scalar_lea.vmem %s1, %s198
        %p200 = pneg %p78
        %p201 = pneg %p75
        %p202 = scmp.lt.s32.totalorder %s21, 1
        %s203 = scalar_select %p202, %s21, 1
        %p204 = scmp.lt.s32.totalorder %s22, 0
        %s205 = scalar_select %p204, %s22, 0
        %s206 = sadd.s32 %s205, %s203
        %s207 = scalar_lea.vmem %s2, %s206
        %p208 = pneg %p106
        %p209 = pneg %p103
        %p210 = pneg %p132
        %p211 = pneg %p129
        %s212 = sand.u32 %s119, 1
        %s213 = scalar_lea.sflag [#allocation4], %s212
        %s214 = sand.u32 %s119, 1
        %s215 = scalar_lea.vmem [#allocation3], %s214
        %p216 = scmp.lt.s32.totalorder %s21, 1
        %s217 = scalar_select %p216, %s21, 1
        %s218 = scalar_lea.vmem %s0, %s217
        %s219 = smul.u32 16, %s22
        %p220 = scmp.lt.s32.totalorder %s21, 1
        %s221 = scalar_select %p220, %s21, 1
        %p222 = scmp.lt.s32.totalorder %s219, 15
        %s223 = scalar_select %p222, %s219, 15
        %s224 = smul.addr %s221, 16
        %s225 = sadd.s32 %s223, %s224
        %s226 = smul.addr %s225, 8
        %s227 = scalar_lea.vmem %s1, %s226
        %s228 = smul.u32 16, %s22
        %p229 = scmp.lt.s32.totalorder %s21, 1
        %s230 = scalar_select %p229, %s21, 1
        %p231 = scmp.lt.s32.totalorder %s22, 0
        %s232 = scalar_select %p231, %s22, 0
        %s233 = sadd.s32 %s232, %s230
        %s234 = scalar_lea.vmem %s2, %s233
        %v235 = vld [vmem:[%s227] sm:$0xff]
        %v236 = vld [vmem:[%s227 + $0x8] sm:$0xff]
        %v237 = vld [vmem:[%s227 + $0x10] sm:$0xff]
        %v238 = vld [vmem:[%s227 + $0x18] sm:$0xff]
        %v239 = vld [vmem:[%s227 + $0x20] sm:$0xff]
        %v240 = vld [vmem:[%s227 + $0x28] sm:$0xff]
        %v241 = vld [vmem:[%s227 + $0x30] sm:$0xff]
        %v242 = vld [vmem:[%s227 + $0x38] sm:$0xff]
        %v243 = vld [vmem:[%s227 + $0x40] sm:$0xff]
        %v244 = vld [vmem:[%s227 + $0x48] sm:$0xff]
        %v245 = vld [vmem:[%s227 + $0x50] sm:$0xff]
        %v246 = vld [vmem:[%s227 + $0x58] sm:$0xff]
        %v247 = vld [vmem:[%s227 + $0x60] sm:$0xff]
        %v248 = vld [vmem:[%s227 + $0x68] sm:$0xff]
        %v249 = vld [vmem:[%s227 + $0x70] sm:$0xff]
        %v250 = vld [vmem:[%s227 + $0x78] sm:$0xff]
        %v251 = vld [vmem:[%s218] sm:$0x1]
        %vm252 = vcmask 261120
        %v254 = vsel %vm252, %v251, 0
        %v257 = vsel %vm252, %v235, 0
        %v260 = vsel %vm252, %v236, 0
        %v263 = vsel %vm252, %v237, 0
        %v266 = vsel %vm252, %v238, 0
        %v269 = vsel %vm252, %v239, 0
        %v272 = vsel %vm252, %v240, 0
        %v275 = vsel %vm252, %v241, 0
        %v278 = vsel %vm252, %v242, 0
        %v281 = vsel %vm252, %v243, 0
        %v284 = vsel %vm252, %v244, 0
        %v287 = vsel %vm252, %v245, 0
        %v290 = vsel %vm252, %v246, 0
        %v293 = vsel %vm252, %v247, 0
        %v296 = vsel %vm252, %v248, 0
        %v299 = vsel %vm252, %v249, 0
        %v302 = vsel %vm252, %v250, 0
        %304 = vmatpush.xpose.msra.mxu0 %v302
        %305 = vmatpush.xpose.msra.mxu0 %v299
        %306 = vmatpush.xpose.msra.mxu0 %v296
        %307 = vmatpush.xpose.msra.mxu0 %v293
        %308 = vmatpush.xpose.msra.mxu0 %v290
        %309 = vmatpush.xpose.msra.mxu0 %v287
        %310 = vmatpush.xpose.msra.mxu0 %v284
        %311 = vmatpush.xpose.msra.mxu0 %v281
        %312 = vmatpush.xpose.msra.mxu0 %v278
        %313 = vmatpush.xpose.msra.mxu0 %v275
        %314 = vmatpush.xpose.msra.mxu0 %v272
        %315 = vmatpush.xpose.msra.mxu0 %v269
        %316 = vmatpush.xpose.msra.mxu0 %v266
        %317 = vmatpush.xpose.msra.mxu0 %v263
        %318 = vmatpush.xpose.msra.mxu0 %v260
        %319 = vmatpush.xpose.msra.mxu0 %v257
        %320 = vmatmul.f32.gmra.mxu0 %v254
        %v321 = vpop.f32.mrf.mxu0
        %v322 = vadd.f32 0.0, %v321
        %323 = vdwg.mxu0
        %v324 = vld [vmem:[%s234] sm:$0x1]
        %vm325 = vcmp.eq.f32.partialorder %v324, 0.0
        %v326 = vsel %vm325, -1e+30, %v322
        %s327 = smul.u32 %s22, 128
        %s328 = sshra.s32 %s327, 7
        %s329 = sand.u32 %s327, 127
        %s330 = scalar_lea.vmem [#allocation2], %s328
        %331 = vst [vmem:[%s330] sm:$0x1] %v326
        %p332 = scmp.eq.s32.totalorder %s22, 0
        // Predicated region
        $region33: #{tpu_custom_call.1} parent=31 // pred_check
          %p333 = pneg %p332
        $region34: #{tpu_custom_call.1} parent=31 // pred_check_branch
          %335 = sbr.rel (%p333) target = $region36
        $region35: #{tpu_custom_call.1} parent=31 // pred_region
          %v336 = vld [vmem:[#allocation2] sm:$0x1]
          %v337 = vlaneseq
          %v338 = vand.u32 %v337, 127
          %vm339 = vcmask 1040384
          %v340 = vsel %vm339, %v336, -inf
          %341 = vmax.xlane.f32.xlu0 %v340
          %v342 = vpop.xlane.xlu0 %341
          %vm343 = vcmp.eq.f32.partialorder %v336, %v342
          %v344 = vsel %vm343, %v338, 128
          %v345 = vsel %vm339, %v344, 2147483647
          %v346 = vand.u32 %v345, 65535
          %v347 = vshra.s32 %v345, 16
          %v348 = vcvt.s32.f32 %v346
          %v349 = vcvt.s32.f32 %v347
          %350 = vmin.xlane.f32.xlu0 %v349
          %v351 = vpop.xlane.xlu0 %350
          %vm352 = vcmp.eq.f32.partialorder %v349, %v351
          %v353 = vsel %vm352, %v348, inf
          %354 = vmin.xlane.f32.xlu0 %v353
          %v355 = vpop.xlane.xlu0 %354
          %v356 = vcvt.f32.s32 %v355
          %v357 = vcvt.f32.s32 %v351
          %v358 = vshll.u32 %v357, 16
          %v359 = vadd.s32 %v358, %v356
          %vm360 = vcmp.eq.s32.totalorder %v338, %v359
          %v361 = vsel %vm360, 1.0, 0.0
          %v362 = vsel %vm360, -inf, %v336
          %v363 = vsel %vm339, %v362, -inf
          %364 = vmax.xlane.f32.xlu0 %v363
          %v365 = vpop.xlane.xlu0 %364
          %vm366 = vcmp.eq.f32.partialorder %v362, %v365
          %v367 = vsel %vm366, %v338, 128
          %v368 = vsel %vm339, %v367, 2147483647
          %v369 = vand.u32 %v368, 65535
          %v370 = vshra.s32 %v368, 16
          %v371 = vcvt.s32.f32 %v369
          %v372 = vcvt.s32.f32 %v370
          %373 = vmin.xlane.f32.xlu0 %v372
          %v374 = vpop.xlane.xlu0 %373
          %vm375 = vcmp.eq.f32.partialorder %v372, %v374
          %v376 = vsel %vm375, %v371, inf
          %377 = vmin.xlane.f32.xlu0 %v376
          %v378 = vpop.xlane.xlu0 %377
          %v379 = vcvt.f32.s32 %v378
          %v380 = vcvt.f32.s32 %v374
          %v381 = vshll.u32 %v380, 16
          %v382 = vadd.s32 %v381, %v379
          %vm383 = vcmp.eq.s32.totalorder %v338, %v382
          %v384 = vsel %vm383, 1.0, %v361
          %v385 = vsel %vm383, -inf, %v362
          %v386 = vsel %vm339, %v385, -inf
          %387 = vmax.xlane.f32.xlu0 %v386
          %v388 = vpop.xlane.xlu0 %387
          %vm389 = vcmp.eq.f32.partialorder %v385, %v388
          %v390 = vsel %vm389, %v338, 128
          %v391 = vsel %vm339, %v390, 2147483647
          %v392 = vand.u32 %v391, 65535
          %v393 = vshra.s32 %v391, 16
          %v394 = vcvt.s32.f32 %v392
          %v395 = vcvt.s32.f32 %v393
          %396 = vmin.xlane.f32.xlu0 %v395
          %v397 = vpop.xlane.xlu0 %396
          %vm398 = vcmp.eq.f32.partialorder %v395, %v397
          %v399 = vsel %vm398, %v394, inf
          %400 = vmin.xlane.f32.xlu0 %v399
          %v401 = vpop.xlane.xlu0 %400
          %v402 = vcvt.f32.s32 %v401
          %v403 = vcvt.f32.s32 %v397
          %v404 = vshll.u32 %v403, 16
          %v405 = vadd.s32 %v404, %v402
          %vm406 = vcmp.eq.s32.totalorder %v338, %v405
          %v407 = vsel %vm406, 1.0, %v384
          %v408 = vsel %vm406, -inf, %v385
          %v409 = vsel %vm339, %v408, -inf
          %410 = vmax.xlane.f32.xlu0 %v409
          %v411 = vpop.xlane.xlu0 %410
          %vm412 = vcmp.eq.f32.partialorder %v408, %v411
          %v413 = vsel %vm412, %v338, 128
          %v414 = vsel %vm339, %v413, 2147483647
          %v415 = vand.u32 %v414, 65535
          %v416 = vshra.s32 %v414, 16
          %v417 = vcvt.s32.f32 %v415
          %v418 = vcvt.s32.f32 %v416
          %419 = vmin.xlane.f32.xlu0 %v418
          %v420 = vpop.xlane.xlu0 %419
          %vm421 = vcmp.eq.f32.partialorder %v418, %v420
          %v422 = vsel %vm421, %v417, inf
          %423 = vmin.xlane.f32.xlu0 %v422
          %v424 = vpop.xlane.xlu0 %423
          %v425 = vcvt.f32.s32 %v424
          %v426 = vcvt.f32.s32 %v420
          %v427 = vshll.u32 %v426, 16
          %v428 = vadd.s32 %v427, %v425
          %vm429 = vcmp.eq.s32.totalorder %v338, %v428
          %v430 = vsel %vm429, 1.0, %v407
          %v431 = vsel %vm429, -inf, %v408
          %v432 = vsel %vm339, %v431, -inf
          %433 = vmax.xlane.f32.xlu0 %v432
          %v434 = vpop.xlane.xlu0 %433
          %vm435 = vcmp.eq.f32.partialorder %v431, %v434
          %v436 = vsel %vm435, %v338, 128
          %v437 = vsel %vm339, %v436, 2147483647
          %v438 = vand.u32 %v437, 65535
          %v439 = vshra.s32 %v437, 16
          %v440 = vcvt.s32.f32 %v438
          %v441 = vcvt.s32.f32 %v439
          %442 = vmin.xlane.f32.xlu0 %v441
          %v443 = vpop.xlane.xlu0 %442
          %vm444 = vcmp.eq.f32.partialorder %v441, %v443
          %v445 = vsel %vm444, %v440, inf
          %446 = vmin.xlane.f32.xlu0 %v445
          %v447 = vpop.xlane.xlu0 %446
          %v448 = vcvt.f32.s32 %v447
          %v449 = vcvt.f32.s32 %v443
          %v450 = vshll.u32 %v449, 16
          %v451 = vadd.s32 %v450, %v448
          %vm452 = vcmp.eq.s32.totalorder %v338, %v451
          %v453 = vsel %vm452, 1.0, %v430
          %v454 = vsel %vm452, -inf, %v431
          %v455 = vsel %vm339, %v454, -inf
          %456 = vmax.xlane.f32.xlu0 %v455
          %v457 = vpop.xlane.xlu0 %456
          %vm458 = vcmp.eq.f32.partialorder %v454, %v457
          %v459 = vsel %vm458, %v338, 128
          %v460 = vsel %vm339, %v459, 2147483647
          %v461 = vand.u32 %v460, 65535
          %v462 = vshra.s32 %v460, 16
          %v463 = vcvt.s32.f32 %v461
          %v464 = vcvt.s32.f32 %v462
          %465 = vmin.xlane.f32.xlu0 %v464
          %v466 = vpop.xlane.xlu0 %465
          %vm467 = vcmp.eq.f32.partialorder %v464, %v466
          %v468 = vsel %vm467, %v463, inf
          %469 = vmin.xlane.f32.xlu0 %v468
          %v470 = vpop.xlane.xlu0 %469
          %v471 = vcvt.f32.s32 %v470
          %v472 = vcvt.f32.s32 %v466
          %v473 = vshll.u32 %v472, 16
          %v474 = vadd.s32 %v473, %v471
          %vm475 = vcmp.eq.s32.totalorder %v338, %v474
          %v476 = vsel %vm475, 1.0, %v453
          %v477 = vsel %vm475, -inf, %v454
          %v478 = vsel %vm339, %v477, -inf
          %479 = vmax.xlane.f32.xlu0 %v478
          %v480 = vpop.xlane.xlu0 %479
          %vm481 = vcmp.eq.f32.partialorder %v477, %v480
          %v482 = vsel %vm481, %v338, 128
          %v483 = vsel %vm339, %v482, 2147483647
          %v484 = vand.u32 %v483, 65535
          %v485 = vshra.s32 %v483, 16
          %v486 = vcvt.s32.f32 %v484
          %v487 = vcvt.s32.f32 %v485
          %488 = vmin.xlane.f32.xlu0 %v487
          %v489 = vpop.xlane.xlu0 %488
          %vm490 = vcmp.eq.f32.partialorder %v487, %v489
          %v491 = vsel %vm490, %v486, inf
          %492 = vmin.xlane.f32.xlu0 %v491
          %v493 = vpop.xlane.xlu0 %492
          %v494 = vcvt.f32.s32 %v493
          %v495 = vcvt.f32.s32 %v489
          %v496 = vshll.u32 %v495, 16
          %v497 = vadd.s32 %v496, %v494
          %vm498 = vcmp.eq.s32.totalorder %v338, %v497
          %v499 = vsel %vm498, 1.0, %v476
          %v500 = vsel %vm498, -inf, %v477
          %v501 = vsel %vm339, %v500, -inf
          %502 = vmax.xlane.f32.xlu0 %v501
          %v503 = vpop.xlane.xlu0 %502
          %vm504 = vcmp.eq.f32.partialorder %v500, %v503
          %v505 = vsel %vm504, %v338, 128
          %v506 = vsel %vm339, %v505, 2147483647
          %v507 = vand.u32 %v506, 65535
          %v508 = vshra.s32 %v506, 16
          %v509 = vcvt.s32.f32 %v507
          %v510 = vcvt.s32.f32 %v508
          %511 = vmin.xlane.f32.xlu0 %v510
          %v512 = vpop.xlane.xlu0 %511
          %vm513 = vcmp.eq.f32.partialorder %v510, %v512
          %v514 = vsel %vm513, %v509, inf
          %515 = vmin.xlane.f32.xlu0 %v514
          %v516 = vpop.xlane.xlu0 %515
          %v517 = vcvt.f32.s32 %v516
          %v518 = vcvt.f32.s32 %v512
          %v519 = vshll.u32 %v518, 16
          %v520 = vadd.s32 %v519, %v517
          %vm521 = vcmp.eq.s32.totalorder %v338, %v520
          %v522 = vsel %vm521, 1.0, %v499
          %v523 = vsel %vm521, -inf, %v500
          %v524 = vsel %vm339, %v523, -inf
          %525 = vmax.xlane.f32.xlu0 %v524
          %v526 = vpop.xlane.xlu0 %525
          %vm527 = vcmp.eq.f32.partialorder %v523, %v526
          %v528 = vsel %vm527, %v338, 128
          %v529 = vsel %vm339, %v528, 2147483647
          %v530 = vand.u32 %v529, 65535
          %v531 = vshra.s32 %v529, 16
          %v532 = vcvt.s32.f32 %v530
          %v533 = vcvt.s32.f32 %v531
          %534 = vmin.xlane.f32.xlu0 %v533
          %v535 = vpop.xlane.xlu0 %534
          %vm536 = vcmp.eq.f32.partialorder %v533, %v535
          %v537 = vsel %vm536, %v532, inf
          %538 = vmin.xlane.f32.xlu0 %v537
          %v539 = vpop.xlane.xlu0 %538
          %v540 = vcvt.f32.s32 %v539
          %v541 = vcvt.f32.s32 %v535
          %v542 = vshll.u32 %v541, 16
          %v543 = vadd.s32 %v542, %v540
          %vm544 = vcmp.eq.s32.totalorder %v338, %v543
          %v545 = vsel %vm544, 1.0, %v522
          %v546 = vsel %vm544, -inf, %v523
          %v547 = vsel %vm339, %v546, -inf
          %548 = vmax.xlane.f32.xlu0 %v547
          %v549 = vpop.xlane.xlu0 %548
          %vm550 = vcmp.eq.f32.partialorder %v546, %v549
          %v551 = vsel %vm550, %v338, 128
          %v552 = vsel %vm339, %v551, 2147483647
          %v553 = vand.u32 %v552, 65535
          %v554 = vshra.s32 %v552, 16
          %v555 = vcvt.s32.f32 %v553
          %v556 = vcvt.s32.f32 %v554
          %557 = vmin.xlane.f32.xlu0 %v556
          %v558 = vpop.xlane.xlu0 %557
          %vm559 = vcmp.eq.f32.partialorder %v556, %v558
          %v560 = vsel %vm559, %v555, inf
          %561 = vmin.xlane.f32.xlu0 %v560
          %v562 = vpop.xlane.xlu0 %561
          %v563 = vcvt.f32.s32 %v562
          %v564 = vcvt.f32.s32 %v558
          %v565 = vshll.u32 %v564, 16
          %v566 = vadd.s32 %v565, %v563
          %vm567 = vcmp.eq.s32.totalorder %v338, %v566
          %v568 = vsel %vm567, 1.0, %v545
          %569 = vst [vmem:[%s215] sm:$0x1] %v568
        $region36: #{tpu_custom_call.1} parent=31 // pred_fallthru
          _
        %s570 = sand.u32 %s119, 1
        %s571 = scalar_lea.sflag [#allocation4], %s570
        %s572 = sand.u32 %s119, 1
        %s573 = scalar_lea.vmem [#allocation3], %s572
        // Predicated region
        $region37: #{tpu_custom_call.1} parent=31 // pred_check
          %p574 = pneg %p129
        $region38: #{tpu_custom_call.1} parent=31 // pred_check_branch
          %576 = sbr.rel (%p574) target = $region40
        $region39: #{tpu_custom_call.1} parent=31 // pred_region
          %578 = vsyncadd %s571, 0
          %s579 = scalar_lea.hbm %s3, %s21
          %s581 = sshll.u32 %s573, 4
          %s582 = int_to_ptr.vmem [resolvable:$true] %s581
          %s583 = sshll.u32 %s579, 4
          %s584 = int_to_ptr.hbm [resolvable:$true] %s583
          %586 = dma.vmem_to_hbm [thread:$0]  %s582, 16, %s584, %s571
        $region40: #{tpu_custom_call.1} parent=31 // pred_fallthru
          _
      $region32: #{tpu_custom_call.1} parent=5 // pred_fallthru
        _
      %p587 = scmp.le.s32.totalorder 2, %s12
      // Predicated region
      $region41: #{tpu_custom_call.1} parent=5 // pred_check
        %p588 = pneg %p587
      $region42: #{tpu_custom_call.1} parent=5 // pred_check_branch
        %590 = sbr.rel (%p588) target = $region44
      $region43: #{tpu_custom_call.1} parent=5 // pred_region
        %s591 = ssub.s32 %s12, 2
        // Predicated region
        $region45: #{tpu_custom_call.1} parent=43 // pred_check
          %p592 = pneg %p135
        $region46: #{tpu_custom_call.1} parent=43 // pred_check_branch
          %594 = sbr.rel (%p592) target = $region48
        $region47: #{tpu_custom_call.1} parent=43 // pred_region
          %s595 = sand.u32 %s120, 1
          %s596 = scalar_lea.sflag [#allocation4], %s595
          %s597 = sand.u32 %s120, 1
          %s598 = scalar_lea.vmem [#allocation3], %s597
          %600 = dma.done %s596, 16
        $region48: #{tpu_custom_call.1} parent=43 // pred_fallthru
          _
      $region44: #{tpu_custom_call.1} parent=5 // pred_fallthru
        _
    $region6: #{tpu_custom_call.1} parent=1 // loop_footer
      %s16 = sadd.s32 1, %s12
    $region7: #{tpu_custom_call.1} parent=1 // loop_footer_branch
      %11 = sbr.rel target = $region3
    $region8: #{tpu_custom_call.1} parent=1 // loop_exit
      _
    %601 = vsyncpa [#allocation4], 1
    %s602 = scalar_lea.sflag [#allocation4], 1
    %603 = vsyncpa %s602, 1

</llo_original>
